<compile_context>
chip_gen: v7x
topology: tpu7x:2x2x1
jax: 0.10.0
libtpu: 0.0.40
codegen_flags: <defaults>
</compile_context>

<pallas_src>
import jax
import jax.numpy as jnp
from jax.experimental import pallas as pl
from jax.experimental.pallas import tpu as pltpu


def _round_up(x, m):
    return ((x + m - 1) // m) * m


def _largest_divisor_leq(n, cap):
    cap = max(1, min(cap, n))
    for d in range(cap, 0, -1):
        if n % d == 0:
            return d
    return 1


def _spres_kernel(x_ref, w_ref, o_ref):
    # x_ref: (bn, C_in, THW)  channels on sublanes, spatial on lanes
    # w_ref: (C_out, C_in)    tiny, resident across the whole grid
    # o_ref: (bn, C_out, THW) lane-dense output tile
    w = w_ref[...]
    for b in range(x_ref.shape[0]):  # static unroll, bn <= 16
        y = jnp.dot(w, x_ref[b], preferred_element_type=jnp.float32)
        o_ref[b] = jnp.tanh(y).astype(o_ref.dtype)


def _choose_tiling(n, hw, block_hw, max_bn):
    """Pick (images per step, spatial columns per step)."""
    if hw >= block_hw:
        # Large images: one image per step, balanced lane-dense spatial tiles.
        bn = 1
        n_tiles = pl.cdiv(hw, block_hw)
        thw = min(hw, _round_up(pl.cdiv(hw, n_tiles), 128))
    else:
        # Small images: full-extent spatial block (fully contiguous HBM read),
        # several images per grid step so each step still moves ~MiBs.
        cap = min(max_bn, max(1, block_hw // max(hw, 1)), n)
        if n >= 2:
            cap = min(cap, n // 2)  # keep >=2 batch steps for dual-TC chips
        bn = _largest_divisor_leq(n, cap)  # divisor: no ragged batch blocks
        thw = hw
    # Single image AND single spatial tile: split spatially so both
    # TensorCores (v7x megacore) get work.
    if pl.cdiv(n, bn) == 1 and pl.cdiv(hw, thw) == 1 and hw >= 256:
        thw = min(thw, _round_up(pl.cdiv(hw, 2), 128))
    return bn, thw


def spres_forward(x_nchw, weight, *, block_hw=32768, max_bn=16):
    """x_nchw: (N, C_in, H, W); weight: (C_out, C_in, 1, 1). Returns tanh(conv1x1(x))."""
    n, c_in, h, w = x_nchw.shape
    c_out = weight.shape[0]
    hw = h * w

    # Copy-free reshapes (channels-first layout preserved, no transposes).
    x3 = x_nchw.reshape(n, c_in, hw)
    w_mat = weight.reshape(c_out, c_in)

    bn, thw = _choose_tiling(n, hw, block_hw, max_bn)
    grid_hw = pl.cdiv(hw, thw)
    grid_n = pl.cdiv(n, bn)

    # VMEM budget: 2x (double-buffered) input + output blocks, plus weight.
    # Only raise the scoped limit when the caller asks for oversized tiles;
    # the 32768-column default fits every generation's default limit.
    itemsize = jnp.dtype(x_nchw.dtype).itemsize
    in_block = bn * c_in * thw * itemsize
    out_block = bn * c_out * thw * itemsize
    needed_vmem = 2 * (in_block + out_block) + c_out * c_in * 4 + (2 << 20)
    vmem_limit = int(needed_vmem) if needed_vmem > (16 << 20) else None

    flops = 2 * n * hw * c_in * c_out
    bytes_accessed = itemsize * n * hw * (c_in + c_out) + 4 * c_in * c_out

    out3 = pl.pallas_call(
        _spres_kernel,
        out_shape=jax.ShapeDtypeStruct((n, c_out, hw), x_nchw.dtype),
        grid_spec=pltpu.PrefetchScalarGridSpec(
            num_scalar_prefetch=0,
            # Spatial-tile axis first so megacore sharding sees it; both axes
            # are fully independent ("parallel").
            grid=(grid_hw, grid_n),
            in_specs=[
                pl.BlockSpec((bn, c_in, thw), lambda i, g: (g, 0, i)),
                pl.BlockSpec((c_out, c_in), lambda i, g: (0, 0)),  # resident
            ],
            out_specs=pl.BlockSpec((bn, c_out, thw), lambda i, g: (g, 0, i)),
        ),
        compiler_params=pltpu.CompilerParams(
            dimension_semantics=("parallel", "parallel"),
            vmem_limit_bytes=vmem_limit,
        ),
        cost_estimate=pl.CostEstimate(
            flops=int(flops),
            transcendentals=int(n * hw * c_out),
            bytes_accessed=int(bytes_accessed),
        ),
    )(x3, w_mat)

    # Copy-free reshape back to NCHW.
    return out3.reshape(n, c_out, h, w)


def spres_reference(x_nchw, weight):
    # Pure-JAX reference: 1x1 conv (no bias) + tanh.
    w_mat = weight.reshape(weight.shape[0], weight.shape[1])  # (C_out, C_in)
    y = jnp.einsum("nchw,oc->nohw", x_nchw, w_mat)
    return jnp.tanh(y)


if __name__ == "__main__":
    key = jax.random.PRNGKey(0)
    k_x, k_w = jax.random.split(key)

    C_IN, C_OUT = 31, 3
    bound = 1.0 / jnp.sqrt(jnp.float32(C_IN))
    weight = jax.random.uniform(
        k_w, (C_OUT, C_IN, 1, 1), dtype=jnp.float32, minval=-bound, maxval=bound
    )

    # Configs exercise: (0) default full-hw path, (1) batch-blocked bn>1 unroll
    # path, (2) balanced spatial tiling with a ragged last tile, (3) the
    # single-image dual-TensorCore spatial split.
    configs = [
        ((2, C_IN, 16, 16), {}),
        ((4, C_IN, 12, 10), {"block_hw": 256}),
        ((1, C_IN, 32, 20), {"block_hw": 256}),
        ((1, C_IN, 16, 16), {}),
    ]

    for idx, (shape, kwargs) in enumerate(configs):
        kx = jax.random.fold_in(k_x, idx)
        x = jax.random.normal(kx, shape, dtype=jnp.float32)
        out = jax.block_until_ready(spres_forward(x, weight, **kwargs))
        ref = spres_reference(x, weight)
        assert out.shape == ref.shape, (out.shape, ref.shape)
        assert jnp.allclose(out, ref, atol=1e-5, rtol=1e-5), f"mismatch cfg {idx}"

    print("KERNEL_OK")
</pallas_src>

<mosaic_0001>
module attributes {stable_mosaic.version = 11 : i64} {
  func.func @_spres_kernel(%arg0: i32, %arg1: i32, %arg2: memref<1x31x256xf32, #tpu.memory_space<vmem>>, %arg3: memref<3x31xf32, #tpu.memory_space<vmem>>, %arg4: memref<1x3x256xf32, #tpu.memory_space<vmem>>) attributes {dimension_semantics = [#tpu.dimension_semantics<parallel>, #tpu.dimension_semantics<parallel>], iteration_bounds = array<i64: 1, 2>, scalar_prefetch = 0 : i64, scratch_operands = 0 : i64, tpu.core_type = #tpu.core_type<tc>, window_params = [{transform_indices = @transform_0, window_bounds = array<i64: 1, 31, 256>}, {pipeline_mode = #tpu.pipeline_mode<synchronous>, transform_indices = @transform_1, window_bounds = array<i64: 3, 31>}, {transform_indices = @transform_2, window_bounds = array<i64: 1, 3, 256>}]} {
    %c0 = arith.constant 0 : index
    %c0_0 = arith.constant 0 : index
    %0 = vector.load %arg3[%c0, %c0_0] : memref<3x31xf32, #tpu.memory_space<vmem>>, vector<3x31xf32>
    %c0_1 = arith.constant 0 : index
    %c0_2 = arith.constant 0 : index
    %c0_3 = arith.constant 0 : index
    %1 = vector.load %arg2[%c0_1, %c0_2, %c0_3] : memref<1x31x256xf32, #tpu.memory_space<vmem>>, vector<1x31x256xf32>
    %2 = vector.shape_cast %1 : vector<1x31x256xf32> to vector<31x256xf32>
    %cst = arith.constant dense<0.000000e+00> : vector<3x256xf32>
    %3 = tpu.matmul %0, %2, %cst {dimension_numbers = #tpu.dot_dimension_numbers<[1], [0], [0], [1], [0, 0, 1, 1], [], []>} : vector<3x31xf32>, vector<31x256xf32>, vector<3x256xf32> -> vector<3x256xf32>
    %4 = math.tanh %3 : vector<3x256xf32>
    %c0_4 = arith.constant 0 : index
    %c0_5 = arith.constant 0 : index
    %c0_6 = arith.constant 0 : index
    %5 = vector.load %arg4[%c0_4, %c0_5, %c0_6] : memref<1x3x256xf32, #tpu.memory_space<vmem>>, vector<1x3x256xf32>
    %6 = vector.shape_cast %5 : vector<1x3x256xf32> to vector<3x256xf32>
    %7 = vector.shape_cast %4 : vector<3x256xf32> to vector<1x3x256xf32>
    tpu.vector_store %arg4[%c0_4, %c0_5, %c0_6], %7 {strides = array<i32>} : memref<1x3x256xf32, #tpu.memory_space<vmem>>, vector<1x3x256xf32>,
    return
  }
  func.func @transform_0(%arg0: i32, %arg1: i32) -> (i32, i32, i32) {
    %c0_i32 = arith.constant 0 : i32
    %c0_i32_0 = arith.constant 0 : i32
    return %arg1, %c0_i32, %arg0 : i32, i32, i32
  }
  func.func @transform_1(%arg0: i32, %arg1: i32) -> (i32, i32) {
    %c0_i32 = arith.constant 0 : i32
    %c0_i32_0 = arith.constant 0 : i32
    %c0_i32_1 = arith.constant 0 : i32
    return %c0_i32, %c0_i32_0 : i32, i32
  }
  func.func @transform_2(%arg0: i32, %arg1: i32) -> (i32, i32, i32) {
    %c0_i32 = arith.constant 0 : i32
    %c0_i32_0 = arith.constant 0 : i32
    return %arg1, %c0_i32, %arg0 : i32, i32, i32
  }
}

</mosaic_0001>

<llo_original>
// kernel: tpu_custom_call.1
$region0: #{tpu_custom_call.1}
  #allocation0 [shape = 'u32[]', space=smem, size = 0x4, offset = 0x4, fixed_abs, tag = 'smem constant byte address 0x4 - core index']
  #allocation1 [shape = 'u32[144,128]{1,0:T(1,128)}', space=vmem, size = 0x12000, scoped, tag = 'internal scratch']
  %s0 = inlined_call_operand.vmem [shape: f32[2,31,256], index: 0, kind: input, shape index: {}]
  %s1 = inlined_call_operand.vmem [shape: f32[3,31], index: 1, kind: input, shape index: {}]
  %s2 = inlined_call_operand.vmem [shape: f32[2,3,256], index: 2, kind: output, shape index: {}]
  %s3 = sld [smem:[#allocation0]]
  $region41: #{tpu_custom_call.1} parent=0
    _
  %s5 = ssub.s32 1, %s3
  %s6 = scalar_select 0, %s5, %s3
  loop: start=0, step=1, limit=4
  $region2: #{tpu_custom_call.1} parent=0 // loop_pre_header
    _
  $region3: #{tpu_custom_call.1} parent=0 // loop_header
    %s8 = sphi 0, %s12
    %p9 = scmp.ge.s32.totalorder %s8, 4
    %s15 = sphi 0, %s27
    %s16 = sphi 0, %s23
    %s17 = sphi 0, %s15
    %s18 = sphi 0, %s16
    %s19 = sphi 0, %s17
    %s20 = sphi 0, %s18
    %s32 = sphi 0, %s34
    %s35 = sphi 0, %s32
    %s36 = sphi 0, %s35
    %s52 = sphi 0, %s36
    %s56 = sphi 0, %s56
    %s58 = sphi 0, %s56
    %s59 = sphi 0, %s58
    %s73 = sphi 0, %s59
    %s81 = sphi 0, %s83
    %s84 = sphi 0, %s81
    %s85 = sphi 0, %s84
    %s101 = sphi 0, %s85
  $region4: #{tpu_custom_call.1} parent=0 // loop_header_branch
    %11 = sbr.rel (%p9) target = $region8
  $region5: #{tpu_custom_call.1} parent=0 // loop_body
    %s13 = ssub.s32 %s8, 1
    %s14 = ssub.s32 %s8, 2
    %s21 = sadd.s32 1, %s16
    %p22 = scmp.ge.s32.totalorder %s21, 2
    %s23 = scalar_select %p22, 0, %s21
    %s24 = sadd.s32 1, %s15
    %s25 = scalar_select %p22, %s24, %s15
    %p26 = scmp.ge.s32.totalorder %s25, 1
    %s27 = scalar_select %p26, 0, %s25
    %s28 = ssub.s32 %s16, %s23
    %s29 = ssub.s32 %s15, %s27
    %s30 = sor.u32 %s28, %s29
    %p31 = scmp.eq.s32.totalorder %s30, 0
    %s33 = sadd.s32 %s32, 1
    %s34 = scalar_select %p31, %s32, %s33
    %p37 = pneg %p31
    %p38 = scmp.eq.s32.totalorder %s8, 1
    %p39 = por %p37, %p38
    %p40 = scmp.ne.s32.totalorder %s32, %s35
    %p41 = scmp.eq.s32.totalorder %s8, 0
    %p42 = por %p40, %p41
    %p43 = scmp.ne.s32.totalorder %s32, %s35
    %p44 = scmp.eq.s32.totalorder %s13, 1
    %p45 = por %p43, %p44
    %p46 = scmp.ne.s32.totalorder %s35, %s36
    %p47 = scmp.eq.s32.totalorder %s13, 0
    %p48 = por %p46, %p47
    %p49 = scmp.ne.s32.totalorder %s35, %s36
    %p50 = scmp.eq.s32.totalorder %s14, 1
    %p51 = por %p49, %p50
    %p53 = scmp.ne.s32.totalorder %s36, %s52
    %p54 = scmp.eq.s32.totalorder %s14, 0
    %p55 = por %p53, %p54
    %s57 = sadd.s32 %s56, 1
    %p60 = scmp.eq.s32.totalorder %s8, 1
    %p61 = scmp.ne.s32.totalorder %s56, %s58
    %p62 = scmp.eq.s32.totalorder %s8, 0
    %p63 = por %p61, %p62
    %p64 = scmp.ne.s32.totalorder %s56, %s58
    %p65 = scmp.eq.s32.totalorder %s13, 1
    %p66 = por %p64, %p65
    %p67 = scmp.ne.s32.totalorder %s58, %s59
    %p68 = scmp.eq.s32.totalorder %s13, 0
    %p69 = por %p67, %p68
    %p70 = scmp.ne.s32.totalorder %s58, %s59
    %p71 = scmp.eq.s32.totalorder %s14, 1
    %p72 = por %p70, %p71
    %p74 = scmp.ne.s32.totalorder %s59, %s73
    %p75 = scmp.eq.s32.totalorder %s14, 0
    %p76 = por %p74, %p75
    %s77 = ssub.s32 %s16, %s23
    %s78 = ssub.s32 %s15, %s27
    %s79 = sor.u32 %s77, %s78
    %p80 = scmp.eq.s32.totalorder %s79, 0
    %s82 = sadd.s32 %s81, 1
    %s83 = scalar_select %p80, %s81, %s82
    %p86 = pneg %p80
    %p87 = scmp.eq.s32.totalorder %s8, 1
    %p88 = por %p86, %p87
    %p89 = scmp.ne.s32.totalorder %s81, %s84
    %p90 = scmp.eq.s32.totalorder %s8, 0
    %p91 = por %p89, %p90
    %p92 = scmp.ne.s32.totalorder %s81, %s84
    %p93 = scmp.eq.s32.totalorder %s13, 1
    %p94 = por %p92, %p93
    %p95 = scmp.ne.s32.totalorder %s84, %s85
    %p96 = scmp.eq.s32.totalorder %s13, 0
    %p97 = por %p95, %p96
    %p98 = scmp.ne.s32.totalorder %s84, %s85
    %p99 = scmp.eq.s32.totalorder %s14, 1
    %p100 = por %p98, %p99
    %p102 = scmp.ne.s32.totalorder %s85, %s101
    %p103 = scmp.eq.s32.totalorder %s14, 0
    %p104 = por %p102, %p103
    %p105 = scmp.le.s32.totalorder 1, %s8
    %p106 = scmp.lt.s32.totalorder %s8, 3
    %p107 = pnand %p105, %p106
    %p108 = pneg %p107
    // Predicated region
    $region9: #{tpu_custom_call.1} parent=5 // pred_check
      _
    $region10: #{tpu_custom_call.1} parent=5 // pred_check_branch
      %110 = sbr.rel (%p107) target = $region12
    $region11: #{tpu_custom_call.1} parent=5 // pred_region
      %s111 = ssub.s32 %s8, 1
      // Predicated region
      $region13: #{tpu_custom_call.1} parent=11 // pred_check
        %p112 = pneg %p69
      $region14: #{tpu_custom_call.1} parent=11 // pred_check_branch
        %114 = sbr.rel (%p112) target = $region16
      $region15: #{tpu_custom_call.1} parent=11 // pred_region
        _
      $region16: #{tpu_custom_call.1} parent=11 // pred_fallthru
        _
    $region12: #{tpu_custom_call.1} parent=5 // pred_fallthru
      _
    %p115 = scmp.lt.s32.totalorder %s8, 2
    // Predicated region
    $region17: #{tpu_custom_call.1} parent=5 // pred_check
      %p116 = pneg %p115
    $region18: #{tpu_custom_call.1} parent=5 // pred_check_branch
      %118 = sbr.rel (%p116) target = $region20
    $region19: #{tpu_custom_call.1} parent=5 // pred_region
      // Predicated region
      $region21: #{tpu_custom_call.1} parent=19 // pred_check
        %p119 = pneg %p42
      $region22: #{tpu_custom_call.1} parent=19 // pred_check_branch
        %121 = sbr.rel (%p119) target = $region24
      $region23: #{tpu_custom_call.1} parent=19 // pred_region
        %s122 = smul.u32 2, %s15
        %p123 = scmp.lt.s32.totalorder %s16, 1
        %s124 = scalar_select %p123, %s16, 1
        %p125 = scmp.lt.s32.totalorder %s122, 1
        %s126 = scalar_select %p125, %s122, 1
        %s127 = smul.addr %s124, 8
        %s128 = sadd.s32 %s126, %s127
        %s129 = smul.addr %s128, 8
        %s130 = scalar_lea.vmem %s0, %s129
        %s131 = smul.u32 2, %s15
      $region24: #{tpu_custom_call.1} parent=19 // pred_fallthru
        _
    $region20: #{tpu_custom_call.1} parent=5 // pred_fallthru
      _
    %p132 = scmp.le.s32.totalorder 1, %s8
    %p133 = scmp.lt.s32.totalorder %s8, 3
    %p134 = pnand %p132, %p133
    %p135 = pneg %p134
    // Predicated region
    $region25: #{tpu_custom_call.1} parent=5 // pred_check
      _
    $region26: #{tpu_custom_call.1} parent=5 // pred_check_branch
      %137 = sbr.rel (%p134) target = $region28
    $region27: #{tpu_custom_call.1} parent=5 // pred_region
      %s138 = ssub.s32 %s8, 1
      %s139 = smul.u32 2, %s17
      %p140 = scmp.lt.s32.totalorder %s18, 1
      %s141 = scalar_select %p140, %s18, 1
      %p142 = scmp.lt.s32.totalorder %s139, 1
      %s143 = scalar_select %p142, %s139, 1
      %s144 = smul.addr %s141, 8
      %s145 = sadd.s32 %s143, %s144
      %s146 = smul.addr %s145, 8
      %s147 = scalar_lea.vmem %s0, %s146
      %p148 = pneg %p48
      %p149 = pneg %p45
      %p150 = pneg %p69
      %p151 = pneg %p66
      %p152 = pneg %p97
      %p153 = pneg %p94
      %s154 = smul.u32 2, %s17
      %p155 = scmp.lt.s32.totalorder %s18, 1
      %s156 = scalar_select %p155, %s18, 1
      %p157 = scmp.lt.s32.totalorder %s154, 1
      %s158 = scalar_select %p157, %s154, 1
      %s159 = smul.addr %s156, 2
      %s160 = sadd.s32 %s158, %s159
      %s161 = smul.addr %s160, 4
      %s162 = scalar_lea.vmem %s2, %s161
      %s163 = smul.u32 2, %s17
      %p164 = scmp.lt.s32.totalorder %s18, 1
      %s165 = scalar_select %p164, %s18, 1
      %p166 = scmp.lt.s32.totalorder %s163, 1
      %s167 = scalar_select %p166, %s163, 1
      %s168 = smul.addr %s165, 8
      %s169 = sadd.s32 %s167, %s168
      %s170 = smul.addr %s169, 8
      %s171 = scalar_lea.vmem %s0, %s170
      %s172 = smul.u32 2, %s17
      %s173 = smul.u32 2, %s17
      %p174 = scmp.lt.s32.totalorder %s18, 1
      %s175 = scalar_select %p174, %s18, 1
      %p176 = scmp.lt.s32.totalorder %s173, 1
      %s177 = scalar_select %p176, %s173, 1
      %s178 = smul.addr %s175, 2
      %s179 = sadd.s32 %s177, %s178
      %s180 = smul.addr %s179, 4
      %s181 = scalar_lea.vmem %s2, %s180
      %s182 = smul.u32 2, %s17
      %v183 = vld [vmem:[%s1] sm:$0x7]
      %v184 = vld [vmem:[%s171] sm:$0xff]
      %v185 = vld [vmem:[%s171 + $0x8] sm:$0xff]
      %v186 = vld [vmem:[%s171 + $0x10] sm:$0xff]
      %v187 = vld [vmem:[%s171 + $0x18] sm:$0xff]
      %v188 = vld [vmem:[%s171 + $0x20] sm:$0xff]
      %v189 = vld [vmem:[%s171 + $0x28] sm:$0xff]
      %v190 = vld [vmem:[%s171 + $0x30] sm:$0x7f]
      %v191 = vld [vmem:[%s171 + $0x38] sm:$0x7f]
      %vm192 = vcmask 252928
      %v194 = vsel %vm192, %v183, 0
      %vm196 = vcmask 1046528
      %v198 = vsel %vm196, %v190, 0
      %v201 = vsel %vm196, %v191, 0
      %203 = vmatprep.subr.mxu0 %v185
      %204 = vmatpush1.msra.mxu0 %v184
      %205 = vmatprep.subr.mxu0 %v187
      %206 = vmatpush1.msra.mxu0 %v186
      %207 = vmatprep.subr.mxu0 %v189
      %208 = vmatpush1.msra.mxu0 %v188
      %209 = vmatprep.subr.mxu0 %v201
      %210 = vmatpush1.msra.mxu0 %v198
      %211 = vmatprep.subr.mxu0 0.0
      %212 = vmatpush1.msra.mxu0 0.0
      %213 = vmatprep.subr.mxu0 0.0
      %214 = vmatpush1.msra.mxu0 0.0
      %215 = vmatprep.subr.mxu0 0.0
      %216 = vmatpush1.msra.mxu0 0.0
      %217 = vmatprep.subr.mxu0 0.0
      %218 = vmatpush1.msra.mxu0 0.0
      %219 = vmatprep.subr.mxu0 0.0
      %220 = vmatpush1.msra.mxu0 0.0
      %221 = vmatprep.subr.mxu0 0.0
      %222 = vmatpush1.msra.mxu0 0.0
      %223 = vmatprep.subr.mxu0 0.0
      %224 = vmatpush1.msra.mxu0 0.0
      %225 = vmatprep.subr.mxu0 0.0
      %226 = vmatpush1.msra.mxu0 0.0
      %227 = vmatprep.subr.mxu0 0.0
      %228 = vmatpush1.msra.mxu0 0.0
      %229 = vmatprep.subr.mxu0 0.0
      %230 = vmatpush1.msra.mxu0 0.0
      %231 = vmatprep.subr.mxu0 0.0
      %232 = vmatpush1.msra.mxu0 0.0
      %233 = vmatprep.subr.mxu0 0.0
      %234 = vmatpush1.msra.mxu0 0.0
      %235 = vmatprep.subr.mxu0 0.0
      %236 = vmatpush1.msra.mxu0 0.0
      %237 = vmatprep.subr.mxu0 0.0
      %238 = vmatpush1.msra.mxu0 0.0
      %239 = vmatprep.subr.mxu0 0.0
      %240 = vmatpush1.msra.mxu0 0.0
      %241 = vmatprep.subr.mxu0 0.0
      %242 = vmatpush1.msra.mxu0 0.0
      %243 = vmatprep.subr.mxu0 0.0
      %244 = vmatpush1.msra.mxu0 0.0
      %245 = vmatprep.subr.mxu0 0.0
      %246 = vmatpush1.msra.mxu0 0.0
      %247 = vmatprep.subr.mxu0 0.0
      %248 = vmatpush1.msra.mxu0 0.0
      %249 = vmatprep.subr.mxu0 0.0
      %250 = vmatpush1.msra.mxu0 0.0
      %251 = vmatprep.subr.mxu0 0.0
      %252 = vmatpush1.msra.mxu0 0.0
      %253 = vmatprep.subr.mxu0 0.0
      %254 = vmatpush1.msra.mxu0 0.0
      %255 = vmatprep.subr.mxu0 0.0
      %256 = vmatpush1.msra.mxu0 0.0
      %257 = vmatprep.subr.mxu0 0.0
      %258 = vmatpush1.msra.mxu0 0.0
      %259 = vmatprep.subr.mxu0 0.0
      %260 = vmatpush1.msra.mxu0 0.0
      %261 = vmatprep.subr.mxu0 0.0
      %262 = vmatpush1.msra.mxu0 0.0
      %263 = vmatprep.subr.mxu0 0.0
      %264 = vmatpush1.msra.mxu0 0.0
      %265 = vmatprep.subr.mxu0 0.0
      %266 = vmatpush1.msra.mxu0 0.0
      %267 = vmatprep.mubr.f32.mxu0 0.0
      %268 = vmatmul.mubr.f32.gmra.mrb[0].mxu0 %v194
      %v269 = vpop.f32.mrb[0].mxu0
      %v270 = vadd.f32 0.0, %v269
      %v271 = vpop.f32.mrb[0].mxu0
      %v272 = vadd.f32 0.0, %v271
      %273 = vdwg.mxu0
      %v274 = vtanh.pop %v270
      %v275 = vtanh.pop %v272
      %v278 = vcombine.low %v274, %v275
      %280 = vst [vmem:[%s181] sm:$0x77] %v278
      %s281 = smul.u32 2, %s17
      %p282 = scmp.lt.s32.totalorder %s18, 1
      %s283 = scalar_select %p282, %s18, 1
      %p284 = scmp.lt.s32.totalorder %s281, 1
      %s285 = scalar_select %p284, %s281, 1
      %s286 = smul.addr %s283, 2
      %s287 = sadd.s32 %s285, %s286
      %s288 = smul.addr %s287, 4
      %s289 = scalar_lea.vmem %s2, %s288
      // Predicated region
      $region29: #{tpu_custom_call.1} parent=27 // pred_check
        %p290 = pneg %p94
      $region30: #{tpu_custom_call.1} parent=27 // pred_check_branch
        %292 = sbr.rel (%p290) target = $region32
      $region31: #{tpu_custom_call.1} parent=27 // pred_region
        %s293 = smul.u32 2, %s17
      $region32: #{tpu_custom_call.1} parent=27 // pred_fallthru
        _
    $region28: #{tpu_custom_call.1} parent=5 // pred_fallthru
      _
    %p294 = scmp.le.s32.totalorder 2, %s8
    // Predicated region
    $region33: #{tpu_custom_call.1} parent=5 // pred_check
      %p295 = pneg %p294
    $region34: #{tpu_custom_call.1} parent=5 // pred_check_branch
      %297 = sbr.rel (%p295) target = $region36
    $region35: #{tpu_custom_call.1} parent=5 // pred_region
      %s298 = ssub.s32 %s8, 2
      // Predicated region
      $region37: #{tpu_custom_call.1} parent=35 // pred_check
        %p299 = pneg %p100
      $region38: #{tpu_custom_call.1} parent=35 // pred_check_branch
        %301 = sbr.rel (%p299) target = $region40
      $region39: #{tpu_custom_call.1} parent=35 // pred_region
        %s302 = smul.u32 2, %s19
        %p303 = scmp.lt.s32.totalorder %s20, 1
        %s304 = scalar_select %p303, %s20, 1
        %p305 = scmp.lt.s32.totalorder %s302, 1
        %s306 = scalar_select %p305, %s302, 1
        %s307 = smul.addr %s304, 2
        %s308 = sadd.s32 %s306, %s307
        %s309 = smul.addr %s308, 4
        %s310 = scalar_lea.vmem %s2, %s309
      $region40: #{tpu_custom_call.1} parent=35 // pred_fallthru
        _
    $region36: #{tpu_custom_call.1} parent=5 // pred_fallthru
      _
  $region6: #{tpu_custom_call.1} parent=0 // loop_footer
    %s12 = sadd.s32 1, %s8
  $region7: #{tpu_custom_call.1} parent=0 // loop_footer_branch
    %7 = sbr.rel target = $region3
  $region8: #{tpu_custom_call.1} parent=0 // loop_exit
    _

</llo_original>
